<compile_context>
chip_gen: v5e
topology: v5e:2x2
jax: 0.10.0
libtpu: 0.0.40
codegen_flags: <defaults>
</compile_context>

<pallas_src>
import math
from functools import partial

import jax
import jax.numpy as jnp
from jax.experimental import pallas as pl
from jax.experimental.pallas import tpu as pltpu


# The 8 non-center taps of the 3x3 kernel, as (dy, dx) offsets.
_TAPS8 = tuple((dy, dx) for dy in (-1, 0, 1) for dx in (-1, 0, 1)
               if (dy, dx) != (0, 0))


def _shift_window(t, sft, Lc, Lw):
    """y[:, q] = t[:, q + sft] for q in [0, Lc); zero where q+sft is outside [0, Lw).

    Out-of-window columns only ever occur at lane positions the caller masks
    anyway (flattened-row wrap of the dx = +-1 taps), so zero-fill is safe.
    """
    lo = max(sft, 0)
    hi = min(Lw, Lc + sft)
    front = lo - sft
    back = Lc - front - (hi - lo)
    parts = []
    if front > 0:
        parts.append(jnp.zeros((t.shape[0], front), t.dtype))
    parts.append(t[:, lo:hi])
    if back > 0:
        parts.append(jnp.zeros((t.shape[0], back), t.dtype))
    return parts[0] if len(parts) == 1 else jnp.concatenate(parts, axis=1)


def flownet_pred_kernel(xw_ref, wm_ref, wt_ref, bh_ref,
                        off_ref, scale_ref, bias_ref, *, W, RB, F):
    """One (batch, row-block) tile per grid step.

    xw_ref    : (1, 1, Cin, (RB+2)*W)  halo'd window: rows [rb*RB-1, rb*RB+RB+1)
                of the image flattened row-major, with zero rows above/below
                the image (so vertical taps at the image border read zeros).
    wm_ref    : (2F+2, Cin)   [scale (F); bias (F); offset 3x3 center tap (2)]
    wt_ref    : (16, Cin)     8 non-center 3x3 taps x 2 output channels
    bh_ref    : (2F, 1)       [scale bias; bias-head bias]
    off_ref   : (1, 2, RB*W)  flattened NCHW outputs (lane-dense stores)
    scale_ref : (1, F, RB*W)
    bias_ref  : (1, F, RB*W)
    """
    Lc = RB * W
    Lw = Lc + 2 * W

    # --- heads (scale, bias) + the 3x3 conv's center tap: ONE MXU matmul ----
    # over the block's own rows (window columns [W, W+Lc)).
    xc = xw_ref[0, 0, :, W:W + Lc]                                  # (Cin, Lc)
    acc = jnp.dot(wm_ref[...], xc, preferred_element_type=jnp.float32)  # (2F+2, Lc)

    # Sublane-aligned head slices (F is a multiple of 8); per-head bias added
    # only to its own F rows, folded into the output store.
    scale_ref[0] = (acc[0:F] + bh_ref[0:F]).astype(scale_ref.dtype)
    bias_ref[0] = (acc[F:2 * F] + bh_ref[F:2 * F]).astype(bias_ref.dtype)

    # --- 8 non-center 3x3 taps: small MXU matmul over the full halo'd window,
    # then output-side lane shifts of the (2, Lw) per-tap rows, masked for
    # horizontal (row-wrap) validity, accumulated into the two offset rows.
    # Vertical image-boundary taps read the zero halo rows, so no row masks
    # are needed.
    t8 = jnp.dot(wt_ref[...], xw_ref[0, 0],
                 preferred_element_type=jnp.float32)                # (16, Lw)

    col = jax.lax.broadcasted_iota(jnp.int32, (1, Lc), 1) % W
    mask_l = (col != 0).astype(jnp.float32)        # dx = -1 invalid at x == 0
    mask_r = (col != W - 1).astype(jnp.float32)    # dx = +1 invalid at x == W-1

    off = acc[2 * F:2 * F + 2]                     # (2, Lc) f32, center tap
    for t, (dy, dx) in enumerate(_TAPS8):
        sft = (dy + 1) * W + dx                    # window-column source offset
        piece = _shift_window(t8[2 * t:2 * t + 2], sft, Lc, Lw)
        if dx == -1:
            piece = piece * mask_l
        elif dx == 1:
            piece = piece * mask_r
        off = off + piece
    off_ref[0] = off.astype(off_ref.dtype)


def flownet_mini_pred(x_nchw, params, *, rows_per_block=8, compute_dtype=None):
    """x_nchw: (N, Cin, H, W). Returns NCHW (offset, scale, bias)."""
    N, Cin, H, W = x_nchw.shape
    S = H * W
    w_main = params["w_main"]
    F = (w_main.shape[0] - 2) // 2

    RB = max(1, min(H, rows_per_block))            # rows per spatial block
    NB = -(-H // RB)                               # number of row blocks
    Lc, Lw = RB * W, (RB + 2) * W
    out_dtype = x_nchw.dtype
    cdt = jnp.dtype(compute_dtype) if compute_dtype is not None else x_nchw.dtype

    # Flattened NCHW (no transpose); one zero halo row above the image and
    # enough zero rows below it so every block's +/-1-row halo is in bounds.
    x_flat = x_nchw.reshape(N, Cin, S).astype(cdt)
    x_pad = jnp.pad(x_flat, ((0, 0), (0, 0), (W, (NB * RB - H + 1) * W)))
    # Materialize per-block halo'd windows so a plain BlockSpec pipelines them.
    x_win = jnp.stack([x_pad[:, :, rb * Lc:rb * Lc + Lw] for rb in range(NB)],
                      axis=1)                                   # (N, NB, Cin, Lw)

    wm = params["w_main"].astype(cdt)
    wt = params["w_taps8"].astype(cdt)
    bh = params["b_heads"].astype(jnp.float32)

    kernel = partial(flownet_pred_kernel, W=W, RB=RB, F=F)

    out_shape = (
        jax.ShapeDtypeStruct((N, 2, S), out_dtype),
        jax.ShapeDtypeStruct((N, F, S), out_dtype),
        jax.ShapeDtypeStruct((N, F, S), out_dtype),
    )
    in_specs = [
        pl.BlockSpec((1, 1, Cin, Lw), lambda n, rb: (n, rb, 0, 0)),
        pl.BlockSpec((2 * F + 2, Cin), lambda n, rb: (0, 0)),
        pl.BlockSpec((16, Cin), lambda n, rb: (0, 0)),
        pl.BlockSpec((2 * F, 1), lambda n, rb: (0, 0)),
    ]
    out_specs = (
        pl.BlockSpec((1, 2, Lc), lambda n, rb: (n, 0, rb)),
        pl.BlockSpec((1, F, Lc), lambda n, rb: (n, 0, rb)),
        pl.BlockSpec((1, F, Lc), lambda n, rb: (n, 0, rb)),
    )

    off, sc, bs = pl.pallas_call(
        kernel,
        out_shape=out_shape,
        grid=(N, NB),
        in_specs=in_specs,
        out_specs=out_specs,
        compiler_params=pltpu.CompilerParams(
            dimension_semantics=("parallel", "parallel"),
            vmem_limit_bytes=64 * 1024 * 1024,
        ),
    )(x_win, wm, wt, bh)

    return (off.reshape(N, 2, H, W),
            sc.reshape(N, F, H, W),
            bs.reshape(N, F, H, W))


def init_params(key, in_features, num_features):
    """Deterministic init mirroring the PyTorch module's __init__."""
    k_off, k_scale, k_bias = jax.random.split(key, 3)

    def kaiming_fan_in(k, cout, cin, kh, kw):
        fan_in = cin * kh * kw
        std = math.sqrt(2.0 / fan_in)
        return std * jax.random.normal(k, (cout, cin, kh, kw), jnp.float32)

    # PyTorch OIHW weights
    w_off_pt = kaiming_fan_in(k_off, 2, in_features, 3, 3)
    w_scale_pt = kaiming_fan_in(k_scale, num_features, in_features, 1, 1)
    w_bias_pt = kaiming_fan_in(k_bias, num_features, in_features, 1, 1)

    F = num_features
    # Main matmul weight: [scale (F); bias (F); offset 3x3 center tap (2)].
    w_main = jnp.concatenate(
        [w_scale_pt[:, :, 0, 0],            # (F, Cin)
         w_bias_pt[:, :, 0, 0],             # (F, Cin)
         w_off_pt[:, :, 1, 1]], axis=0)     # (2, Cin)  -> (2F+2, Cin)
    # Head biases: scale bias = 1, bias-head bias = 0 (as in the module init).
    b_heads = jnp.concatenate(
        [jnp.ones((F,), jnp.float32),
         jnp.zeros((F,), jnp.float32)])[:, None]               # (2F, 1)
    # 8 non-center 3x3 taps, rows [2t, 2t+1] = output channels of tap t.
    w_taps8 = jnp.concatenate(
        [w_off_pt[:, :, dy + 1, dx + 1] for (dy, dx) in _TAPS8], axis=0)  # (16, Cin)

    params = {"w_main": w_main, "b_heads": b_heads, "w_taps8": w_taps8}
    pt_weights = {"w_off": w_off_pt, "w_scale": w_scale_pt, "w_bias": w_bias_pt}
    return params, pt_weights


def reference_forward(x_nchw, pt_weights, num_features):
    """Pure-JAX NCHW reference matching the PyTorch semantics."""
    dn = ("NCHW", "OIHW", "NCHW")
    off = jax.lax.conv_general_dilated(x_nchw, pt_weights["w_off"], (1, 1),
                                       "SAME", dimension_numbers=dn)
    sc = jax.lax.conv_general_dilated(x_nchw, pt_weights["w_scale"], (1, 1),
                                      "VALID", dimension_numbers=dn)
    sc = sc + jnp.ones((1, num_features, 1, 1), jnp.float32)
    bs = jax.lax.conv_general_dilated(x_nchw, pt_weights["w_bias"], (1, 1),
                                      "VALID", dimension_numbers=dn)
    return off, sc, bs


if __name__ == "__main__":
    N, Cin, H, W = 2, 8, 16, 16       # small in_features; RB*W = 128 (lane-dense)
    F = 32                            # small stand-in for cfg.fpn.num_features

    key = jax.random.PRNGKey(0)
    k_x, k_p = jax.random.split(key)
    x = jax.random.normal(k_x, (N, Cin, H, W), jnp.float32)   # PyTorch NCHW input

    params, pt_weights = init_params(k_p, Cin, F)
    ref_off, ref_sc, ref_bs = reference_forward(x, pt_weights, F)

    # f32 path (matches PyTorch numerics).
    fwd = jax.jit(partial(flownet_mini_pred, rows_per_block=8))
    off, sc, bs = fwd(x, params)
    jax.block_until_ready((off, sc, bs))

    assert off.shape == (N, 2, H, W) and sc.shape == (N, F, H, W) and bs.shape == (N, F, H, W)
    assert jnp.allclose(off, ref_off, atol=1e-4, rtol=1e-4)
    assert jnp.allclose(sc, ref_sc, atol=1e-4, rtol=1e-4)
    assert jnp.allclose(bs, ref_bs, atol=1e-4, rtol=1e-4)

    # bf16 MXU path (production option per perf review); f32 accumulation.
    fwd_bf16 = jax.jit(partial(flownet_mini_pred, rows_per_block=8,
                               compute_dtype=jnp.bfloat16))
    off_b, sc_b, bs_b = fwd_bf16(x, params)
    jax.block_until_ready((off_b, sc_b, bs_b))
    assert jnp.allclose(off_b, ref_off, atol=5e-2, rtol=5e-2)
    assert jnp.allclose(sc_b, ref_sc, atol=5e-2, rtol=5e-2)
    assert jnp.allclose(bs_b, ref_bs, atol=5e-2, rtol=5e-2)

    print("KERNEL_OK")
</pallas_src>

<mosaic_0001>
module attributes {stable_mosaic.version = 11 : i64} {
  func.func @flownet_pred_kernel(%arg0: i32, %arg1: i32, %arg2: memref<1x1x8x160xf32, #tpu.memory_space<vmem>>, %arg3: memref<66x8xf32, #tpu.memory_space<vmem>>, %arg4: memref<16x8xf32, #tpu.memory_space<vmem>>, %arg5: memref<64x1xf32, #tpu.memory_space<vmem>>, %arg6: memref<1x2x128xf32, #tpu.memory_space<vmem>>, %arg7: memref<1x32x128xf32, #tpu.memory_space<vmem>>, %arg8: memref<1x32x128xf32, #tpu.memory_space<vmem>>) attributes {dimension_semantics = [#tpu.dimension_semantics<parallel>, #tpu.dimension_semantics<parallel>], iteration_bounds = array<i64: 2, 2>, scalar_prefetch = 0 : i64, scratch_operands = 0 : i64, tpu.core_type = #tpu.core_type<tc>, window_params = [{transform_indices = @transform_0, window_bounds = array<i64: 1, 1, 8, 160>}, {pipeline_mode = #tpu.pipeline_mode<synchronous>, transform_indices = @transform_1, window_bounds = array<i64: 66, 8>}, {pipeline_mode = #tpu.pipeline_mode<synchronous>, transform_indices = @transform_2, window_bounds = array<i64: 16, 8>}, {pipeline_mode = #tpu.pipeline_mode<synchronous>, transform_indices = @transform_3, window_bounds = array<i64: 64, 1>}, {transform_indices = @transform_4, window_bounds = array<i64: 1, 2, 128>}, {transform_indices = @transform_5, window_bounds = array<i64: 1, 32, 128>}, {transform_indices = @transform_6, window_bounds = array<i64: 1, 32, 128>}]} {
    %c0 = arith.constant 0 : index
    %c0_0 = arith.constant 0 : index
    %c0_1 = arith.constant 0 : index
    %c16 = arith.constant 16 : index
    %0 = vector.load %arg2[%c0, %c0_0, %c0_1, %c16] : memref<1x1x8x160xf32, #tpu.memory_space<vmem>>, vector<1x1x8x128xf32>
    %1 = vector.shape_cast %0 : vector<1x1x8x128xf32> to vector<8x128xf32>
    %c0_2 = arith.constant 0 : index
    %c0_3 = arith.constant 0 : index
    %2 = vector.load %arg3[%c0_2, %c0_3] : memref<66x8xf32, #tpu.memory_space<vmem>>, vector<66x8xf32>
    %cst = arith.constant dense<0.000000e+00> : vector<66x128xf32>
    %3 = tpu.matmul %2, %1, %cst {dimension_numbers = #tpu.dot_dimension_numbers<[1], [0], [0], [1], [0, 0, 1, 1], [], []>} : vector<66x8xf32>, vector<8x128xf32>, vector<66x128xf32> -> vector<66x128xf32>
    %4 = vector.extract_strided_slice %3 {offsets = [0, 0], sizes = [32, 128], strides = [1, 1]} : vector<66x128xf32> to vector<32x128xf32>
    %c0_4 = arith.constant 0 : index
    %c0_5 = arith.constant 0 : index
    %5 = vector.load %arg5[%c0_4, %c0_5] : memref<64x1xf32, #tpu.memory_space<vmem>>, vector<32x1xf32>
    %6 = vector.broadcast %5 : vector<32x1xf32> to vector<32x128xf32>
    %7 = arith.addf %4, %6 : vector<32x128xf32>
    %c0_6 = arith.constant 0 : index
    %c0_7 = arith.constant 0 : index
    %c0_8 = arith.constant 0 : index
    %8 = vector.load %arg7[%c0_6, %c0_7, %c0_8] : memref<1x32x128xf32, #tpu.memory_space<vmem>>, vector<1x32x128xf32>
    %9 = vector.shape_cast %8 : vector<1x32x128xf32> to vector<32x128xf32>
    %10 = vector.shape_cast %7 : vector<32x128xf32> to vector<1x32x128xf32>
    tpu.vector_store %arg7[%c0_6, %c0_7, %c0_8], %10 {strides = array<i32>} : memref<1x32x128xf32, #tpu.memory_space<vmem>>, vector<1x32x128xf32>,
    %11 = vector.extract_strided_slice %3 {offsets = [32, 0], sizes = [32, 128], strides = [1, 1]} : vector<66x128xf32> to vector<32x128xf32>
    %c32 = arith.constant 32 : index
    %c0_9 = arith.constant 0 : index
    %12 = vector.load %arg5[%c32, %c0_9] : memref<64x1xf32, #tpu.memory_space<vmem>>, vector<32x1xf32>
    %13 = vector.broadcast %12 : vector<32x1xf32> to vector<32x128xf32>
    %14 = arith.addf %11, %13 : vector<32x128xf32>
    %c0_10 = arith.constant 0 : index
    %c0_11 = arith.constant 0 : index
    %c0_12 = arith.constant 0 : index
    %15 = vector.load %arg8[%c0_10, %c0_11, %c0_12] : memref<1x32x128xf32, #tpu.memory_space<vmem>>, vector<1x32x128xf32>
    %16 = vector.shape_cast %15 : vector<1x32x128xf32> to vector<32x128xf32>
    %17 = vector.shape_cast %14 : vector<32x128xf32> to vector<1x32x128xf32>
    tpu.vector_store %arg8[%c0_10, %c0_11, %c0_12], %17 {strides = array<i32>} : memref<1x32x128xf32, #tpu.memory_space<vmem>>, vector<1x32x128xf32>,
    %c0_13 = arith.constant 0 : index
    %c0_14 = arith.constant 0 : index
    %18 = vector.load %arg4[%c0_13, %c0_14] : memref<16x8xf32, #tpu.memory_space<vmem>>, vector<16x8xf32>
    %c0_15 = arith.constant 0 : index
    %c0_16 = arith.constant 0 : index
    %c0_17 = arith.constant 0 : index
    %c0_18 = arith.constant 0 : index
    %19 = vector.load %arg2[%c0_15, %c0_16, %c0_17, %c0_18] : memref<1x1x8x160xf32, #tpu.memory_space<vmem>>, vector<1x1x8x160xf32>
    %20 = vector.shape_cast %19 : vector<1x1x8x160xf32> to vector<8x160xf32>
    %cst_19 = arith.constant dense<0.000000e+00> : vector<16x160xf32>
    %21 = tpu.matmul %18, %20, %cst_19 {dimension_numbers = #tpu.dot_dimension_numbers<[1], [0], [0], [1], [0, 0, 1, 1], [], []>} : vector<16x8xf32>, vector<8x160xf32>, vector<16x160xf32> -> vector<16x160xf32>
    %22 = tpu.iota {dimensions = array<i32: 1>} : vector<1x128xi32>
    %c16_i32 = arith.constant 16 : i32
    %c0_i32 = arith.constant 0 : i32
    %23 = arith.cmpi eq, %c16_i32, %c0_i32 : i32
    %c1_i32 = arith.constant 1 : i32
    %24 = arith.select %23, %c1_i32, %c16_i32 : i32
    %25 = vector.broadcast %24 : i32 to vector<1x128xi32>
    %26 = arith.remsi %22, %25 : vector<1x128xi32>
    %c0_i32_20 = arith.constant 0 : i32
    %27 = vector.broadcast %c0_i32_20 : i32 to vector<1x128xi32>
    %28 = arith.cmpi ne, %26, %27 : vector<1x128xi32>
    %c0_i32_21 = arith.constant 0 : i32
    %29 = vector.broadcast %c0_i32_21 : i32 to vector<1x128xi32>
    %30 = arith.cmpi slt, %26, %29 : vector<1x128xi32>
    %c0_i32_22 = arith.constant 0 : i32
    %31 = arith.cmpi slt, %24, %c0_i32_22 : i32
    %32 = vector.broadcast %31 : i1 to vector<1x128xi1>
    %33 = vector.broadcast %32 : vector<1x128xi1> to vector<1x128xi1>
    %34 = arith.xori %30, %33 : vector<1x128xi1>
    %35 = arith.andi %34, %28 : vector<1x128xi1>
    %36 = vector.broadcast %24 : i32 to vector<1x128xi32>
    %37 = arith.addi %26, %36 : vector<1x128xi32>
    %38 = arith.select %35, %37, %26 : vector<1x128xi1>, vector<1x128xi32>
    %c0_i32_23 = arith.constant 0 : i32
    %39 = vector.broadcast %c0_i32_23 : i32 to vector<1x128xi32>
    %40 = arith.cmpi ne, %38, %39 : vector<1x128xi32>
    %41 = arith.extui %40 : vector<1x128xi1> to vector<1x128xi32>
    %42 = arith.sitofp %41 : vector<1x128xi32> to vector<1x128xf32>
    %c15_i32 = arith.constant 15 : i32
    %43 = vector.broadcast %c15_i32 : i32 to vector<1x128xi32>
    %44 = arith.cmpi ne, %38, %43 : vector<1x128xi32>
    %45 = arith.extui %44 : vector<1x128xi1> to vector<1x128xi32>
    %46 = arith.sitofp %45 : vector<1x128xi32> to vector<1x128xf32>
    %47 = vector.extract_strided_slice %3 {offsets = [64, 0], sizes = [2, 128], strides = [1, 1]} : vector<66x128xf32> to vector<2x128xf32>
    %48 = vector.extract_strided_slice %21 {offsets = [0, 0], sizes = [2, 160], strides = [1, 1]} : vector<16x160xf32> to vector<2x160xf32>
    %cst_24 = arith.constant 0.000000e+00 : f32
    %49 = vector.broadcast %cst_24 : f32 to vector<2x1xf32>
    %50 = vector.extract_strided_slice %48 {offsets = [0, 0], sizes = [2, 127], strides = [1, 1]} : vector<2x160xf32> to vector<2x127xf32>
    %51 = tpu.concatenate %49, %50 in 1 : vector<2x1xf32>, vector<2x127xf32> -> vector<2x128xf32>
    %52 = vector.broadcast %42 : vector<1x128xf32> to vector<2x128xf32>
    %53 = arith.mulf %51, %52 : vector<2x128xf32>
    %54 = arith.addf %47, %53 : vector<2x128xf32>
    %55 = vector.extract_strided_slice %21 {offsets = [2, 0], sizes = [2, 160], strides = [1, 1]} : vector<16x160xf32> to vector<2x160xf32>
    %56 = vector.extract_strided_slice %55 {offsets = [0, 0], sizes = [2, 128], strides = [1, 1]} : vector<2x160xf32> to vector<2x128xf32>
    %57 = arith.addf %54, %56 : vector<2x128xf32>
    %58 = vector.extract_strided_slice %21 {offsets = [4, 0], sizes = [2, 160], strides = [1, 1]} : vector<16x160xf32> to vector<2x160xf32>
    %59 = vector.extract_strided_slice %58 {offsets = [0, 1], sizes = [2, 128], strides = [1, 1]} : vector<2x160xf32> to vector<2x128xf32>
    %60 = vector.broadcast %46 : vector<1x128xf32> to vector<2x128xf32>
    %61 = arith.mulf %59, %60 : vector<2x128xf32>
    %62 = arith.addf %57, %61 : vector<2x128xf32>
    %63 = vector.extract_strided_slice %21 {offsets = [6, 0], sizes = [2, 160], strides = [1, 1]} : vector<16x160xf32> to vector<2x160xf32>
    %64 = vector.extract_strided_slice %63 {offsets = [0, 15], sizes = [2, 128], strides = [1, 1]} : vector<2x160xf32> to vector<2x128xf32>
    %65 = vector.broadcast %42 : vector<1x128xf32> to vector<2x128xf32>
    %66 = arith.mulf %64, %65 : vector<2x128xf32>
    %67 = arith.addf %62, %66 : vector<2x128xf32>
    %68 = vector.extract_strided_slice %21 {offsets = [8, 0], sizes = [2, 160], strides = [1, 1]} : vector<16x160xf32> to vector<2x160xf32>
    %69 = vector.extract_strided_slice %68 {offsets = [0, 17], sizes = [2, 128], strides = [1, 1]} : vector<2x160xf32> to vector<2x128xf32>
    %70 = vector.broadcast %46 : vector<1x128xf32> to vector<2x128xf32>
    %71 = arith.mulf %69, %70 : vector<2x128xf32>
    %72 = arith.addf %67, %71 : vector<2x128xf32>
    %73 = vector.extract_strided_slice %21 {offsets = [10, 0], sizes = [2, 160], strides = [1, 1]} : vector<16x160xf32> to vector<2x160xf32>
    %74 = vector.extract_strided_slice %73 {offsets = [0, 31], sizes = [2, 128], strides = [1, 1]} : vector<2x160xf32> to vector<2x128xf32>
    %75 = vector.broadcast %42 : vector<1x128xf32> to vector<2x128xf32>
    %76 = arith.mulf %74, %75 : vector<2x128xf32>
    %77 = arith.addf %72, %76 : vector<2x128xf32>
    %78 = vector.extract_strided_slice %21 {offsets = [12, 0], sizes = [2, 160], strides = [1, 1]} : vector<16x160xf32> to vector<2x160xf32>
    %79 = vector.extract_strided_slice %78 {offsets = [0, 32], sizes = [2, 128], strides = [1, 1]} : vector<2x160xf32> to vector<2x128xf32>
    %80 = arith.addf %77, %79 : vector<2x128xf32>
    %81 = vector.extract_strided_slice %21 {offsets = [14, 0], sizes = [2, 160], strides = [1, 1]} : vector<16x160xf32> to vector<2x160xf32>
    %82 = vector.extract_strided_slice %81 {offsets = [0, 33], sizes = [2, 127], strides = [1, 1]} : vector<2x160xf32> to vector<2x127xf32>
    %cst_25 = arith.constant 0.000000e+00 : f32
    %83 = vector.broadcast %cst_25 : f32 to vector<2x1xf32>
    %84 = tpu.concatenate %82, %83 in 1 : vector<2x127xf32>, vector<2x1xf32> -> vector<2x128xf32>
    %85 = vector.broadcast %46 : vector<1x128xf32> to vector<2x128xf32>
    %86 = arith.mulf %84, %85 : vector<2x128xf32>
    %87 = arith.addf %80, %86 : vector<2x128xf32>
    %c0_26 = arith.constant 0 : index
    %c0_27 = arith.constant 0 : index
    %c0_28 = arith.constant 0 : index
    %88 = vector.load %arg6[%c0_26, %c0_27, %c0_28] : memref<1x2x128xf32, #tpu.memory_space<vmem>>, vector<1x2x128xf32>
    %89 = vector.shape_cast %88 : vector<1x2x128xf32> to vector<2x128xf32>
    %90 = vector.shape_cast %87 : vector<2x128xf32> to vector<1x2x128xf32>
    tpu.vector_store %arg6[%c0_26, %c0_27, %c0_28], %90 {strides = array<i32>} : memref<1x2x128xf32, #tpu.memory_space<vmem>>, vector<1x2x128xf32>,
    return
  }
  func.func @transform_0(%arg0: i32, %arg1: i32) -> (i32, i32, i32, i32) {
    %c0_i32 = arith.constant 0 : i32
    %c0_i32_0 = arith.constant 0 : i32
    %c0_i32_1 = arith.constant 0 : i32
    return %arg0, %arg1, %c0_i32, %c0_i32_0 : i32, i32, i32, i32
  }
  func.func @transform_1(%arg0: i32, %arg1: i32) -> (i32, i32) {
    %c0_i32 = arith.constant 0 : i32
    %c0_i32_0 = arith.constant 0 : i32
    %c0_i32_1 = arith.constant 0 : i32
    return %c0_i32, %c0_i32_0 : i32, i32
  }
  func.func @transform_2(%arg0: i32, %arg1: i32) -> (i32, i32) {
    %c0_i32 = arith.constant 0 : i32
    %c0_i32_0 = arith.constant 0 : i32
    %c0_i32_1 = arith.constant 0 : i32
    return %c0_i32, %c0_i32_0 : i32, i32
  }
  func.func @transform_3(%arg0: i32, %arg1: i32) -> (i32, i32) {
    %c0_i32 = arith.constant 0 : i32
    %c0_i32_0 = arith.constant 0 : i32
    %c0_i32_1 = arith.constant 0 : i32
    return %c0_i32, %c0_i32_0 : i32, i32
  }
  func.func @transform_4(%arg0: i32, %arg1: i32) -> (i32, i32, i32) {
    %c0_i32 = arith.constant 0 : i32
    %c0_i32_0 = arith.constant 0 : i32
    return %arg0, %c0_i32, %arg1 : i32, i32, i32
  }
  func.func @transform_5(%arg0: i32, %arg1: i32) -> (i32, i32, i32) {
    %c0_i32 = arith.constant 0 : i32
    %c0_i32_0 = arith.constant 0 : i32
    return %arg0, %c0_i32, %arg1 : i32, i32, i32
  }
  func.func @transform_6(%arg0: i32, %arg1: i32) -> (i32, i32, i32) {
    %c0_i32 = arith.constant 0 : i32
    %c0_i32_0 = arith.constant 0 : i32
    return %arg0, %c0_i32, %arg1 : i32, i32, i32
  }
}

</mosaic_0001>

<llo_original>
// kernel: flownet_mini_pred.1
$region0: #{flownet_mini_pred.1}
  #allocation0 [shape = 'u32[]', space=smem, size = 0x4, offset = 0x4, fixed_abs, tag = 'smem constant byte address 0x4 - core index']
  #allocation1 [shape = 'u32[72,128]{1,0:T(1,128)}', space=vmem, size = 0x9000, scoped, tag = 'internal scratch']
  %s0 = inlined_call_operand.vmem [shape: f32[2,2,8,160], index: 0, kind: input, shape index: {}]
  %s1 = inlined_call_operand.vmem [shape: f32[66,8], index: 1, kind: input, shape index: {}]
  %s2 = inlined_call_operand.vmem [shape: f32[16,8], index: 2, kind: input, shape index: {}]
  %s3 = inlined_call_operand.vmem [shape: f32[64,1], index: 3, kind: input, shape index: {}]
  %s4 = inlined_call_operand.vmem [shape: f32[2,2,256], index: 4, kind: output, shape index: {0}]
  %s5 = inlined_call_operand.vmem [shape: f32[2,32,256], index: 5, kind: output, shape index: {1}]
  %s6 = inlined_call_operand.vmem [shape: f32[2,32,256], index: 6, kind: output, shape index: {2}]
  %7 = xla_tuple %s4, %s5, %s6
  %s8 = sld [smem:[#allocation0]]
  $region133: #{flownet_mini_pred.1} parent=0
    _
  %s10 = ssub.s32 1, %s8
  %s11 = scalar_select 0, %s10, %s8
  $region1: #{flownet_mini_pred.1} parent=0
    #allocation2 [shape = 'u8[32768]{0}', space=vmem, size = 0x8000, scoped, tag = 'output window, operand 1']
    #allocation3 [shape = 'u8[32768]{0}', space=vmem, size = 0x8000, scoped, tag = 'output window, operand 2']
    loop: start=0, step=1, limit=6
    $region2: #{flownet_mini_pred.1} parent=1 // loop_pre_header
      _
    $region3: #{flownet_mini_pred.1} parent=1 // loop_header
      %s13 = sphi 0, %s17
      %p14 = scmp.ge.s32.totalorder %s13, 6
      %s20 = sphi 0, %s32
      %s21 = sphi 0, %s28
      %s22 = sphi 0, %s20
      %s23 = sphi 0, %s21
      %s24 = sphi 0, %s22
      %s25 = sphi 0, %s23
      %s37 = sphi 0, %s39
      %s40 = sphi 0, %s37
      %s41 = sphi 0, %s40
      %s57 = sphi 0, %s41
      %s61 = sphi 0, %s61
      %s63 = sphi 0, %s61
      %s64 = sphi 0, %s63
      %s78 = sphi 0, %s64
      %s82 = sphi 0, %s82
      %s84 = sphi 0, %s82
      %s85 = sphi 0, %s84
      %s99 = sphi 0, %s85
      %s103 = sphi 0, %s103
      %s105 = sphi 0, %s103
      %s106 = sphi 0, %s105
      %s120 = sphi 0, %s106
      %s128 = sphi 0, %s130
      %s131 = sphi 0, %s128
      %s132 = sphi 0, %s131
      %s148 = sphi 0, %s132
      %s156 = sphi 0, %s158
      %s159 = sphi 0, %s156
      %s160 = sphi 0, %s159
      %s176 = sphi 0, %s160
      %s184 = sphi 0, %s186
      %s187 = sphi 0, %s184
      %s188 = sphi 0, %s187
      %s204 = sphi 0, %s188
    $region4: #{flownet_mini_pred.1} parent=1 // loop_header_branch
      %16 = sbr.rel (%p14) target = $region8
    $region5: #{flownet_mini_pred.1} parent=1 // loop_body
      %s18 = ssub.s32 %s13, 1
      %s19 = ssub.s32 %s13, 2
      %s26 = sadd.s32 1, %s21
      %p27 = scmp.ge.s32.totalorder %s26, 2
      %s28 = scalar_select %p27, 0, %s26
      %s29 = sadd.s32 1, %s20
      %s30 = scalar_select %p27, %s29, %s20
      %p31 = scmp.ge.s32.totalorder %s30, 2
      %s32 = scalar_select %p31, 0, %s30
      %s33 = ssub.s32 %s20, %s32
      %s34 = ssub.s32 %s21, %s28
      %s35 = sor.u32 %s33, %s34
      %p36 = scmp.eq.s32.totalorder %s35, 0
      %s38 = sadd.s32 %s37, 1
      %s39 = scalar_select %p36, %s37, %s38
      %p42 = pneg %p36
      %p43 = scmp.eq.s32.totalorder %s13, 3
      %p44 = por %p42, %p43
      %p45 = scmp.ne.s32.totalorder %s37, %s40
      %p46 = scmp.eq.s32.totalorder %s13, 0
      %p47 = por %p45, %p46
      %p48 = scmp.ne.s32.totalorder %s37, %s40
      %p49 = scmp.eq.s32.totalorder %s18, 3
      %p50 = por %p48, %p49
      %p51 = scmp.ne.s32.totalorder %s40, %s41
      %p52 = scmp.eq.s32.totalorder %s18, 0
      %p53 = por %p51, %p52
      %p54 = scmp.ne.s32.totalorder %s40, %s41
      %p55 = scmp.eq.s32.totalorder %s19, 3
      %p56 = por %p54, %p55
      %p58 = scmp.ne.s32.totalorder %s41, %s57
      %p59 = scmp.eq.s32.totalorder %s19, 0
      %p60 = por %p58, %p59
      %s62 = sadd.s32 %s61, 1
      %p65 = scmp.eq.s32.totalorder %s13, 3
      %p66 = scmp.ne.s32.totalorder %s61, %s63
      %p67 = scmp.eq.s32.totalorder %s13, 0
      %p68 = por %p66, %p67
      %p69 = scmp.ne.s32.totalorder %s61, %s63
      %p70 = scmp.eq.s32.totalorder %s18, 3
      %p71 = por %p69, %p70
      %p72 = scmp.ne.s32.totalorder %s63, %s64
      %p73 = scmp.eq.s32.totalorder %s18, 0
      %p74 = por %p72, %p73
      %p75 = scmp.ne.s32.totalorder %s63, %s64
      %p76 = scmp.eq.s32.totalorder %s19, 3
      %p77 = por %p75, %p76
      %p79 = scmp.ne.s32.totalorder %s64, %s78
      %p80 = scmp.eq.s32.totalorder %s19, 0
      %p81 = por %p79, %p80
      %s83 = sadd.s32 %s82, 1
      %p86 = scmp.eq.s32.totalorder %s13, 3
      %p87 = scmp.ne.s32.totalorder %s82, %s84
      %p88 = scmp.eq.s32.totalorder %s13, 0
      %p89 = por %p87, %p88
      %p90 = scmp.ne.s32.totalorder %s82, %s84
      %p91 = scmp.eq.s32.totalorder %s18, 3
      %p92 = por %p90, %p91
      %p93 = scmp.ne.s32.totalorder %s84, %s85
      %p94 = scmp.eq.s32.totalorder %s18, 0
      %p95 = por %p93, %p94
      %p96 = scmp.ne.s32.totalorder %s84, %s85
      %p97 = scmp.eq.s32.totalorder %s19, 3
      %p98 = por %p96, %p97
      %p100 = scmp.ne.s32.totalorder %s85, %s99
      %p101 = scmp.eq.s32.totalorder %s19, 0
      %p102 = por %p100, %p101
      %s104 = sadd.s32 %s103, 1
      %p107 = scmp.eq.s32.totalorder %s13, 3
      %p108 = scmp.ne.s32.totalorder %s103, %s105
      %p109 = scmp.eq.s32.totalorder %s13, 0
      %p110 = por %p108, %p109
      %p111 = scmp.ne.s32.totalorder %s103, %s105
      %p112 = scmp.eq.s32.totalorder %s18, 3
      %p113 = por %p111, %p112
      %p114 = scmp.ne.s32.totalorder %s105, %s106
      %p115 = scmp.eq.s32.totalorder %s18, 0
      %p116 = por %p114, %p115
      %p117 = scmp.ne.s32.totalorder %s105, %s106
      %p118 = scmp.eq.s32.totalorder %s19, 3
      %p119 = por %p117, %p118
      %p121 = scmp.ne.s32.totalorder %s106, %s120
      %p122 = scmp.eq.s32.totalorder %s19, 0
      %p123 = por %p121, %p122
      %s124 = ssub.s32 %s20, %s32
      %s125 = ssub.s32 %s21, %s28
      %s126 = sor.u32 %s124, %s125
      %p127 = scmp.eq.s32.totalorder %s126, 0
      %s129 = sadd.s32 %s128, 1
      %s130 = scalar_select %p127, %s128, %s129
      %p133 = pneg %p127
      %p134 = scmp.eq.s32.totalorder %s13, 3
      %p135 = por %p133, %p134
      %p136 = scmp.ne.s32.totalorder %s128, %s131
      %p137 = scmp.eq.s32.totalorder %s13, 0
      %p138 = por %p136, %p137
      %p139 = scmp.ne.s32.totalorder %s128, %s131
      %p140 = scmp.eq.s32.totalorder %s18, 3
      %p141 = por %p139, %p140
      %p142 = scmp.ne.s32.totalorder %s131, %s132
      %p143 = scmp.eq.s32.totalorder %s18, 0
      %p144 = por %p142, %p143
      %p145 = scmp.ne.s32.totalorder %s131, %s132
      %p146 = scmp.eq.s32.totalorder %s19, 3
      %p147 = por %p145, %p146
      %p149 = scmp.ne.s32.totalorder %s132, %s148
      %p150 = scmp.eq.s32.totalorder %s19, 0
      %p151 = por %p149, %p150
      %s152 = ssub.s32 %s20, %s32
      %s153 = ssub.s32 %s21, %s28
      %s154 = sor.u32 %s152, %s153
      %p155 = scmp.eq.s32.totalorder %s154, 0
      %s157 = sadd.s32 %s156, 1
      %s158 = scalar_select %p155, %s156, %s157
      %p161 = pneg %p155
      %p162 = scmp.eq.s32.totalorder %s13, 3
      %p163 = por %p161, %p162
      %p164 = scmp.ne.s32.totalorder %s156, %s159
      %p165 = scmp.eq.s32.totalorder %s13, 0
      %p166 = por %p164, %p165
      %p167 = scmp.ne.s32.totalorder %s156, %s159
      %p168 = scmp.eq.s32.totalorder %s18, 3
      %p169 = por %p167, %p168
      %p170 = scmp.ne.s32.totalorder %s159, %s160
      %p171 = scmp.eq.s32.totalorder %s18, 0
      %p172 = por %p170, %p171
      %p173 = scmp.ne.s32.totalorder %s159, %s160
      %p174 = scmp.eq.s32.totalorder %s19, 3
      %p175 = por %p173, %p174
      %p177 = scmp.ne.s32.totalorder %s160, %s176
      %p178 = scmp.eq.s32.totalorder %s19, 0
      %p179 = por %p177, %p178
      %s180 = ssub.s32 %s20, %s32
      %s181 = ssub.s32 %s21, %s28
      %s182 = sor.u32 %s180, %s181
      %p183 = scmp.eq.s32.totalorder %s182, 0
      %s185 = sadd.s32 %s184, 1
      %s186 = scalar_select %p183, %s184, %s185
      %p189 = pneg %p183
      %p190 = scmp.eq.s32.totalorder %s13, 3
      %p191 = por %p189, %p190
      %p192 = scmp.ne.s32.totalorder %s184, %s187
      %p193 = scmp.eq.s32.totalorder %s13, 0
      %p194 = por %p192, %p193
      %p195 = scmp.ne.s32.totalorder %s184, %s187
      %p196 = scmp.eq.s32.totalorder %s18, 3
      %p197 = por %p195, %p196
      %p198 = scmp.ne.s32.totalorder %s187, %s188
      %p199 = scmp.eq.s32.totalorder %s18, 0
      %p200 = por %p198, %p199
      %p201 = scmp.ne.s32.totalorder %s187, %s188
      %p202 = scmp.eq.s32.totalorder %s19, 3
      %p203 = por %p201, %p202
      %p205 = scmp.ne.s32.totalorder %s188, %s204
      %p206 = scmp.eq.s32.totalorder %s19, 0
      %p207 = por %p205, %p206
      %p208 = scmp.le.s32.totalorder 1, %s13
      %p209 = scmp.lt.s32.totalorder %s13, 5
      %p210 = pnand %p208, %p209
      %p211 = pneg %p210
      // Predicated region
      $region9: #{flownet_mini_pred.1} parent=5 // pred_check
        _
      $region10: #{flownet_mini_pred.1} parent=5 // pred_check_branch
        %213 = sbr.rel (%p210) target = $region12
      $region11: #{flownet_mini_pred.1} parent=5 // pred_region
        %s214 = ssub.s32 %s13, 1
        // Predicated region
        $region13: #{flownet_mini_pred.1} parent=11 // pred_check
          %p215 = pneg %p74
        $region14: #{flownet_mini_pred.1} parent=11 // pred_check_branch
          %217 = sbr.rel (%p215) target = $region16
        $region15: #{flownet_mini_pred.1} parent=11 // pred_region
          _
        $region16: #{flownet_mini_pred.1} parent=11 // pred_fallthru
          _
        // Predicated region
        $region17: #{flownet_mini_pred.1} parent=11 // pred_check
          %p218 = pneg %p95
        $region18: #{flownet_mini_pred.1} parent=11 // pred_check_branch
          %220 = sbr.rel (%p218) target = $region20
        $region19: #{flownet_mini_pred.1} parent=11 // pred_region
          _
        $region20: #{flownet_mini_pred.1} parent=11 // pred_fallthru
          _
        // Predicated region
        $region21: #{flownet_mini_pred.1} parent=11 // pred_check
          %p221 = pneg %p116
        $region22: #{flownet_mini_pred.1} parent=11 // pred_check_branch
          %223 = sbr.rel (%p221) target = $region24
        $region23: #{flownet_mini_pred.1} parent=11 // pred_region
          _
        $region24: #{flownet_mini_pred.1} parent=11 // pred_fallthru
          _
      $region12: #{flownet_mini_pred.1} parent=5 // pred_fallthru
        _
      %p224 = scmp.lt.s32.totalorder %s13, 4
      // Predicated region
      $region25: #{flownet_mini_pred.1} parent=5 // pred_check
        %p225 = pneg %p224
      $region26: #{flownet_mini_pred.1} parent=5 // pred_check_branch
        %227 = sbr.rel (%p225) target = $region28
      $region27: #{flownet_mini_pred.1} parent=5 // pred_region
        // Predicated region
        $region29: #{flownet_mini_pred.1} parent=27 // pred_check
          %p228 = pneg %p47
        $region30: #{flownet_mini_pred.1} parent=27 // pred_check_branch
          %230 = sbr.rel (%p228) target = $region32
        $region31: #{flownet_mini_pred.1} parent=27 // pred_region
          %p231 = scmp.lt.s32.totalorder %s20, 1
          %s232 = scalar_select %p231, %s20, 1
          %p233 = scmp.lt.s32.totalorder %s21, 1
          %s234 = scalar_select %p233, %s21, 1
          %s235 = smul.addr %s234, 2
          %s236 = smul.addr %s232, 4
          %s237 = sadd.s32 %s235, %s236
          %s238 = smul.addr %s237, 8
          %s239 = scalar_lea.vmem %s0, %s238
        $region32: #{flownet_mini_pred.1} parent=27 // pred_fallthru
          _
      $region28: #{flownet_mini_pred.1} parent=5 // pred_fallthru
        _
      %p240 = scmp.le.s32.totalorder 1, %s13
      %p241 = scmp.lt.s32.totalorder %s13, 5
      %p242 = pnand %p240, %p241
      %p243 = pneg %p242
      // Predicated region
      $region33: #{flownet_mini_pred.1} parent=5 // pred_check
        _
      $region34: #{flownet_mini_pred.1} parent=5 // pred_check_branch
        %245 = sbr.rel (%p242) target = $region36
      $region35: #{flownet_mini_pred.1} parent=5 // pred_region
        %s246 = ssub.s32 %s13, 1
        %p247 = scmp.lt.s32.totalorder %s22, 1
        %s248 = scalar_select %p247, %s22, 1
        %p249 = scmp.lt.s32.totalorder %s23, 1
        %s250 = scalar_select %p249, %s23, 1
        %s251 = smul.addr %s250, 2
        %s252 = smul.addr %s248, 4
        %s253 = sadd.s32 %s251, %s252
        %s254 = smul.addr %s253, 8
        %s255 = scalar_lea.vmem %s0, %s254
        %p256 = pneg %p53
        %p257 = pneg %p50
        %p258 = pneg %p74
        %p259 = pneg %p71
        %p260 = pneg %p95
        %p261 = pneg %p92
        %p262 = pneg %p116
        %p263 = pneg %p113
        %p264 = pneg %p144
        %p265 = pneg %p141
        %p266 = scmp.lt.s32.totalorder %s22, 1
        %s267 = scalar_select %p266, %s22, 1
        %p268 = scmp.lt.s32.totalorder %s23, 1
        %s269 = scalar_select %p268, %s23, 1
        %s270 = smul.addr %s267, 2
        %s271 = sadd.s32 %s269, %s270
        %s272 = smul.addr %s271, 2
        %s273 = scalar_lea.vmem %s4, %s272
        %p274 = pneg %p172
        %p275 = pneg %p169
        %s276 = sand.u32 %s159, 1
        %s277 = sand.u32 %s159, 1
        %s278 = smul.addr %s277, 32
        %s279 = scalar_lea.vmem [#allocation2], %s278
        %p280 = pneg %p200
        %p281 = pneg %p197
        %s282 = sand.u32 %s187, 1
        %s283 = sand.u32 %s187, 1
        %s284 = smul.addr %s283, 32
        %s285 = scalar_lea.vmem [#allocation3], %s284
        %p286 = scmp.lt.s32.totalorder %s22, 1
        %s287 = scalar_select %p286, %s22, 1
        %p288 = scmp.lt.s32.totalorder %s23, 1
        %s289 = scalar_select %p288, %s23, 1
        %s290 = smul.addr %s289, 2
        %s291 = smul.addr %s287, 4
        %s292 = sadd.s32 %s290, %s291
        %s293 = smul.addr %s292, 8
        %s294 = scalar_lea.vmem %s0, %s293
        %p295 = scmp.lt.s32.totalorder %s22, 1
        %s296 = scalar_select %p295, %s22, 1
        %p297 = scmp.lt.s32.totalorder %s23, 1
        %s298 = scalar_select %p297, %s23, 1
        %s299 = smul.addr %s296, 2
        %s300 = sadd.s32 %s298, %s299
        %s301 = smul.addr %s300, 2
        %s302 = scalar_lea.vmem %s4, %s301
        %v303 = vld [vmem:[%s294] sm:$0xff]
        %v304 = vld [vmem:[%s294 + $0x8] sm:$0xff]
        %v305 = vld [vmem:[%s1] sm:$0xff]
        %v306 = vld [vmem:[%s1 + $0x8] sm:$0xff]
        %v307 = vld [vmem:[%s1 + $0x10] sm:$0xff]
        %v308 = vld [vmem:[%s1 + $0x18] sm:$0xff]
        %v309 = vld [vmem:[%s1 + $0x20] sm:$0xff]
        %v310 = vld [vmem:[%s1 + $0x28] sm:$0xff]
        %v311 = vld [vmem:[%s1 + $0x30] sm:$0xff]
        %v312 = vld [vmem:[%s1 + $0x38] sm:$0xff]
        %v313 = vld [vmem:[%s1 + $0x40] sm:$0x3]
        %316 = vrot.lane.b32.xlu0 %v303, 112
        %v317 = vpop.permute.xlu0 %316
        %318 = vrot.lane.b32.xlu0 %v304, 112
        %v319 = vpop.permute.xlu0 %318
        %vm320 = vcmask 916480
        %v321 = vsel %vm320, %v317, %v319
        %vm323 = vcmask 64512
        %v325 = vsel %vm323, %v305, 0
        %v328 = vsel %vm323, %v306, 0
        %v331 = vsel %vm323, %v307, 0
        %v334 = vsel %vm323, %v308, 0
        %v337 = vsel %vm323, %v309, 0
        %v340 = vsel %vm323, %v310, 0
        %v343 = vsel %vm323, %v311, 0
        %v346 = vsel %vm323, %v312, 0
        %v349 = vsel %vm323, %v313, 0
        %351 = vmatpush.msra.mxu0 0.0
        %352 = vmatpush.msra.mxu0 0.0
        %353 = vmatpush.msra.mxu0 0.0
        %354 = vmatpush.msra.mxu0 0.0
        %355 = vmatpush.msra.mxu0 0.0
        %356 = vmatpush.msra.mxu0 0.0
        %357 = vmatpush.msra.mxu0 0.0
        %358 = vmatpush.msra.mxu0 0.0
        %359 = vmatpush.msra.mxu0 0.0
        %360 = vmatpush.msra.mxu0 0.0
        %361 = vmatpush.msra.mxu0 0.0
        %362 = vmatpush.msra.mxu0 0.0
        %363 = vmatpush.msra.mxu0 0.0
        %364 = vmatpush.msra.mxu0 0.0
        %365 = vmatpush.msra.mxu0 0.0
        %366 = vmatpush.msra.mxu0 %v321
        %367 = vmatmul.f32.gmra.mxu0 %v325
        %v368 = vpop.f32.mrf.mxu0
        %v369 = vadd.f32 0.0, %v368
        %370 = vmatmul.f32.gmra.mxu0 %v328
        %v371 = vpop.f32.mrf.mxu0
        %v372 = vadd.f32 0.0, %v371
        %373 = vmatmul.f32.gmra.mxu0 %v331
        %v374 = vpop.f32.mrf.mxu0
        %v375 = vadd.f32 0.0, %v374
        %376 = vmatmul.f32.gmra.mxu0 %v334
        %v377 = vpop.f32.mrf.mxu0
        %v378 = vadd.f32 0.0, %v377
        %379 = vmatmul.f32.gmra.mxu0 %v337
        %v380 = vpop.f32.mrf.mxu0
        %v381 = vadd.f32 0.0, %v380
        %382 = vmatmul.f32.gmra.mxu0 %v340
        %v383 = vpop.f32.mrf.mxu0
        %v384 = vadd.f32 0.0, %v383
        %385 = vmatmul.f32.gmra.mxu0 %v343
        %v386 = vpop.f32.mrf.mxu0
        %v387 = vadd.f32 0.0, %v386
        %388 = vmatmul.f32.gmra.mxu0 %v346
        %v389 = vpop.f32.mrf.mxu0
        %v390 = vadd.f32 0.0, %v389
        %391 = vmatmul.f32.gmra.mxu0 %v349
        %v392 = vpop.f32.mrf.mxu0
        %v393 = vadd.f32 0.0, %v392
        %394 = vdwg.mxu0
        %v395 = vld [vmem:[%s3] sm:$0xff]
        %v396 = vld [vmem:[%s3 + $0x8] sm:$0xff]
        %v397 = vld [vmem:[%s3 + $0x10] sm:$0xff]
        %v398 = vld [vmem:[%s3 + $0x18] sm:$0xff]
        %400 = vset.pattern.permute.xlu0 0
        %401 = vperm.xlu0 %400, %v395
        %v402 = vpop.permute.xlu0 %401
        %405 = vset.pattern.permute.xlu0 0
        %406 = vperm.xlu0 %405, %v396
        %v407 = vpop.permute.xlu0 %406
        %410 = vset.pattern.permute.xlu0 0
        %411 = vperm.xlu0 %410, %v397
        %v412 = vpop.permute.xlu0 %411
        %415 = vset.pattern.permute.xlu0 0
        %416 = vperm.xlu0 %415, %v398
        %v417 = vpop.permute.xlu0 %416
        %v419 = vadd.f32 %v369, %v402
        %v420 = vadd.f32 %v372, %v407
        %v421 = vadd.f32 %v375, %v412
        %v422 = vadd.f32 %v378, %v417
        %423 = vst [vmem:[%s279] sm:$0xff] %v419
        %424 = vst [vmem:[%s279 + $0x8] sm:$0xff] %v420
        %425 = vst [vmem:[%s279 + $0x10] sm:$0xff] %v421
        %426 = vst [vmem:[%s279 + $0x18] sm:$0xff] %v422
        %v427 = vld [vmem:[%s3 + $0x20] sm:$0xff]
        %v428 = vld [vmem:[%s3 + $0x28] sm:$0xff]
        %v429 = vld [vmem:[%s3 + $0x30] sm:$0xff]
        %v430 = vld [vmem:[%s3 + $0x38] sm:$0xff]
        %432 = vset.pattern.permute.xlu0 0
        %433 = vperm.xlu0 %432, %v427
        %v434 = vpop.permute.xlu0 %433
        %437 = vset.pattern.permute.xlu0 0
        %438 = vperm.xlu0 %437, %v428
        %v439 = vpop.permute.xlu0 %438
        %442 = vset.pattern.permute.xlu0 0
        %443 = vperm.xlu0 %442, %v429
        %v444 = vpop.permute.xlu0 %443
        %447 = vset.pattern.permute.xlu0 0
        %448 = vperm.xlu0 %447, %v430
        %v449 = vpop.permute.xlu0 %448
        %v451 = vadd.f32 %v381, %v434
        %v452 = vadd.f32 %v384, %v439
        %v453 = vadd.f32 %v387, %v444
        %v454 = vadd.f32 %v390, %v449
        %455 = vst [vmem:[%s285] sm:$0xff] %v451
        %456 = vst [vmem:[%s285 + $0x8] sm:$0xff] %v452
        %457 = vst [vmem:[%s285 + $0x10] sm:$0xff] %v453
        %458 = vst [vmem:[%s285 + $0x18] sm:$0xff] %v454
        %v459 = vld [vmem:[%s2] sm:$0xff]
        %v460 = vld [vmem:[%s2 + $0x8] sm:$0xff]
        %v461 = vld [vmem:[%s294] sm:$0xff]
        %v462 = vld [vmem:[%s294 + $0x8] sm:$0xff]
        %v464 = vsel %vm323, %v459, 0
        %v467 = vsel %vm323, %v460, 0
        %469 = vmatpush.msra.mxu0 0.0
        %470 = vmatpush.msra.mxu0 0.0
        %471 = vmatpush.msra.mxu0 0.0
        %472 = vmatpush.msra.mxu0 0.0
        %473 = vmatpush.msra.mxu0 0.0
        %474 = vmatpush.msra.mxu0 0.0
        %475 = vmatpush.msra.mxu0 0.0
        %476 = vmatpush.msra.mxu0 0.0
        %477 = vmatpush.msra.mxu0 0.0
        %478 = vmatpush.msra.mxu0 0.0
        %479 = vmatpush.msra.mxu0 0.0
        %480 = vmatpush.msra.mxu0 0.0
        %481 = vmatpush.msra.mxu0 0.0
        %482 = vmatpush.msra.mxu0 0.0
        %483 = vmatpush.msra.mxu0 0.0
        %484 = vmatpush.msra.mxu0 %v461
        %485 = vmatmul.f32.gmra.mxu0 %v464
        %v486 = vpop.f32.mrf.mxu0
        %v487 = vadd.f32 0.0, %v486
        %488 = vmatmul.f32.gmra.mxu0 %v467
        %v489 = vpop.f32.mrf.mxu0
        %v490 = vadd.f32 0.0, %v489
        %491 = vdwg.mxu0
        %492 = vmatpush.msra.mxu0 0.0
        %493 = vmatpush.msra.mxu0 0.0
        %494 = vmatpush.msra.mxu0 0.0
        %495 = vmatpush.msra.mxu0 0.0
        %496 = vmatpush.msra.mxu0 0.0
        %497 = vmatpush.msra.mxu0 0.0
        %498 = vmatpush.msra.mxu0 0.0
        %499 = vmatpush.msra.mxu0 0.0
        %500 = vmatpush.msra.mxu0 0.0
        %501 = vmatpush.msra.mxu0 0.0
        %502 = vmatpush.msra.mxu0 0.0
        %503 = vmatpush.msra.mxu0 0.0
        %504 = vmatpush.msra.mxu0 0.0
        %505 = vmatpush.msra.mxu0 0.0
        %506 = vmatpush.msra.mxu0 0.0
        %507 = vmatpush.msra.mxu0 %v462
        %508 = vmatmul.f32.gmra.mxu0 %v464
        %v509 = vpop.f32.mrf.mxu0
        %v510 = vadd.f32 0.0, %v509
        %511 = vmatmul.f32.gmra.mxu0 %v467
        %v512 = vpop.f32.mrf.mxu0
        %v513 = vadd.f32 0.0, %v512
        %514 = vdwg.mxu0
        %v515 = vlaneseq
        %v516 = vand.u32 %v515, 127
        %vm517 = vcmp.lt.s32.totalorder %v516, 0
        %v518 = vsub.s32 0, %v516
        %v519 = vsel %vm517, %v518, %v516
        %v520 = vshrl.u32 %v519, 4
        %v521 = vand.u32 %v519, 15
        %v522 = vsub.s32 0, %v521
        %v523 = vsel %vm517, %v522, %v521
        %vm524 = vcmp.ne.s32.totalorder %v523, 0
        %vm525 = vcmp.lt.s32.totalorder %v523, 0
        %vm526 = vmand %vm525, %vm524
        %v527 = vadd.s32 %v523, 16
        %v528 = vsel %vm526, %v527, %v523
        %vm529 = vcmp.ne.s32.totalorder %v528, 0
        %v530 = vsel %vm529, 1, 0
        %v531 = vcvt.s32.f32 %v530
        %vm532 = vcmp.ne.s32.totalorder %v528, 15
        %v533 = vsel %vm532, 1, 0
        %v534 = vcvt.s32.f32 %v533
        %536 = vrot.lane.b32.xlu0 %v487, 1
        %v537 = vpop.permute.xlu0 %536
        %vm539 = vcmask 7168
        %v540 = vsel %vm539, 0.0, %v537
        %v541 = vmul.f32 %v540, %v531
        %v542 = vadd.f32 %v393, %v541
        %v543 = vrot.slane %v487, 2
        %v545 = vadd.f32 %v542, %v543
        %547 = vrot.lane.b32.xlu0 %v534, 1
        %v548 = vpop.permute.xlu0 %547
        %v550 = vmul.f32 %v487, %v548
        %v551 = vmul.f32 %v510, %v548
        %v554 = vrot.slane %v550, 4
        %v555 = vrot.slane %v551, 4
        %556 = vrot.lane.b32.xlu0 %v554, 127
        %v557 = vpop.permute.xlu0 %556
        %558 = vrot.lane.b32.xlu0 %v555, 127
        %v559 = vpop.permute.xlu0 %558
        %vm560 = vcmask 1039360
        %v561 = vsel %vm560, %v557, %v559
        %v563 = vadd.f32 %v545, %v561
        %565 = vrot.lane.b32.xlu0 %v531, 15
        %v566 = vpop.permute.xlu0 %565
        %v568 = vmul.f32 %v487, %v566
        %v569 = vmul.f32 %v510, %v566
        %v572 = vrot.slane %v568, 6
        %v573 = vrot.slane %v569, 6
        %574 = vrot.lane.b32.xlu0 %v572, 113
        %v575 = vpop.permute.xlu0 %574
        %576 = vrot.lane.b32.xlu0 %v573, 113
        %v577 = vpop.permute.xlu0 %576
        %vm578 = vcmask 924672
        %v579 = vsel %vm578, %v575, %v577
        %v581 = vadd.f32 %v563, %v579
        %582 = vrot.lane.b32.xlu0 %v534, 17
        %v583 = vpop.permute.xlu0 %582
        %v585 = vmul.f32 %v490, %v583
        %v586 = vmul.f32 %v513, %v583
        %589 = vrot.lane.b32.xlu0 %v585, 111
        %v590 = vpop.permute.xlu0 %589
        %591 = vrot.lane.b32.xlu0 %v586, 111
        %v592 = vpop.permute.xlu0 %591
        %vm593 = vcmask 908288
        %v594 = vsel %vm593, %v590, %v592
        %v596 = vadd.f32 %v581, %v594
        %597 = vrot.lane.b32.xlu0 %v531, 31
        %v598 = vpop.permute.xlu0 %597
        %v600 = vmul.f32 %v490, %v598
        %v601 = vmul.f32 %v513, %v598
        %v604 = vrot.slane %v600, 2
        %v605 = vrot.slane %v601, 2
        %606 = vrot.lane.b32.xlu0 %v604, 97
        %v607 = vpop.permute.xlu0 %606
        %608 = vrot.lane.b32.xlu0 %v605, 97
        %v609 = vpop.permute.xlu0 %608
        %vm610 = vcmask 793600
        %v611 = vsel %vm610, %v607, %v609
        %v613 = vadd.f32 %v596, %v611
        %v616 = vrot.slane %v490, 4
        %v617 = vrot.slane %v513, 4
        %618 = vrot.lane.b32.xlu0 %v616, 96
        %v619 = vpop.permute.xlu0 %618
        %620 = vrot.lane.b32.xlu0 %v617, 96
        %v621 = vpop.permute.xlu0 %620
        %vm622 = vcmask 785408
        %v623 = vsel %vm622, %v619, %v621
        %v625 = vadd.f32 %v613, %v623
        %626 = vrot.lane.b32.xlu0 %v490, 95
        %v627 = vpop.permute.xlu0 %626
        %628 = vrot.lane.b32.xlu0 %v513, 95
        %v629 = vpop.permute.xlu0 %628
        %vm630 = vcmask 777216
        %v631 = vsel %vm630, %v627, %v629
        %v633 = vsel %vm560, %v631, 0.0
        %v634 = vmul.f32 %v633, %v534
        %v636 = vrot.slane %v634, 6
        %v638 = vadd.f32 %v625, %v636
        %639 = vst [vmem:[%s302] sm:$0x3] %v638
        %p640 = scmp.lt.s32.totalorder %s22, 1
        %s641 = scalar_select %p640, %s22, 1
        %p642 = scmp.lt.s32.totalorder %s23, 1
        %s643 = scalar_select %p642, %s23, 1
        %s644 = smul.addr %s641, 2
        %s645 = sadd.s32 %s643, %s644
        %s646 = smul.addr %s645, 2
        %s647 = scalar_lea.vmem %s4, %s646
        %s648 = sand.u32 %s159, 1
        %s649 = sand.u32 %s159, 1
        %s650 = smul.addr %s649, 32
        %s651 = scalar_lea.vmem [#allocation2], %s650
        %s652 = sand.u32 %s187, 1
        %s653 = sand.u32 %s187, 1
        %s654 = smul.addr %s653, 32
        %s655 = scalar_lea.vmem [#allocation3], %s654
        // Predicated region
        $region37: #{flownet_mini_pred.1} parent=35 // pred_check
          %p656 = pneg %p141
        $region38: #{flownet_mini_pred.1} parent=35 // pred_check_branch
          %658 = sbr.rel (%p656) target = $region40
        $region39: #{flownet_mini_pred.1} parent=35 // pred_region
          _
        $region40: #{flownet_mini_pred.1} parent=35 // pred_fallthru
          _
        // Predicated region
        $region41: #{flownet_mini_pred.1} parent=35 // pred_check
          %p659 = pneg %p169
        $region42: #{flownet_mini_pred.1} parent=35 // pred_check_branch
          %661 = sbr.rel (%p659) target = $region44
        $region43: #{flownet_mini_pred.1} parent=35 // pred_region
          %s662 = smul.addr %s22, 8
          %s663 = sadd.s32 %s23, %s662
          %s664 = smul.addr %s663, 8
          %s665 = scalar_lea.vmem %s5, %s664
          // Predicated region
          $region45: #{flownet_mini_pred.1} parent=43 // pred_check
            _
          $region46: #{flownet_mini_pred.1} parent=43 // pred_check_branch
            %667 = sbr.rel (0) target = $region48
          $region47: #{flownet_mini_pred.1} parent=43 // pred_region
            // Predicated region
            $region49: #{flownet_mini_pred.1} parent=47 // pred_check
              _
            $region50: #{flownet_mini_pred.1} parent=47 // pred_check_branch
              %669 = sbr.rel (0) target = $region52
            $region51: #{flownet_mini_pred.1} parent=47 // pred_region
              // Predicated region
              $region64: #{flownet_mini_pred.1} parent=51 // pred_check
                _
              $region65: #{flownet_mini_pred.1} parent=51 // pred_check_branch
                %691 = sbr.rel (0) target = $region67
              $region66: #{flownet_mini_pred.1} parent=51 // pred_region
                loop: start=0, step=1, limit=1
                $region68: #{flownet_mini_pred.1} parent=66 // loop_pre_header
                  _
                $region69: #{flownet_mini_pred.1} parent=66 // loop_header
                  %s693 = sphi 0, %s697
                  %p694 = scmp.ge.s32.totalorder %s693, 1
                  %s698 = sphi %s651, %s651
                  %s699 = sphi %s665, %s665
                $region70: #{flownet_mini_pred.1} parent=66 // loop_header_branch
                  %696 = sbr.rel (%p694) target = $region74
                $region71: #{flownet_mini_pred.1} parent=66 // loop_body
                  %v700 = vld [vmem:[%s698] sm:$0xff]
                  %701 = vst [vmem:[%s699] sm:$0xff] %v700
                  %v702 = vld [vmem:[%s698 + $0x8] sm:$0xff]
                  %703 = vst [vmem:[%s699 + $0x10] sm:$0xff] %v702
                  %v704 = vld [vmem:[%s698 + $0x10] sm:$0xff]
                  %705 = vst [vmem:[%s699 + $0x20] sm:$0xff] %v704
                  %v706 = vld [vmem:[%s698 + $0x18] sm:$0xff]
                  %707 = vst [vmem:[%s699 + $0x30] sm:$0xff] %v706
                $region72: #{flownet_mini_pred.1} parent=66 // loop_footer
                  %s697 = sadd.s32 1, %s693
                $region73: #{flownet_mini_pred.1} parent=66 // loop_footer_branch
                  %692 = sbr.rel target = $region69
                $region74: #{flownet_mini_pred.1} parent=66 // loop_exit
                  _
              $region67: #{flownet_mini_pred.1} parent=51 // pred_fallthru
                _
              // Predicated region
              $region75: #{flownet_mini_pred.1} parent=51 // pred_check
                _
              $region76: #{flownet_mini_pred.1} parent=51 // pred_check_branch
                %709 = sbr.rel target = $region78
              $region77: #{flownet_mini_pred.1} parent=51 // pred_region
                _
              $region78: #{flownet_mini_pred.1} parent=51 // pred_fallthru
                _
            $region52: #{flownet_mini_pred.1} parent=47 // pred_fallthru
              _
            // Predicated region
            $region53: #{flownet_mini_pred.1} parent=47 // pred_check
              _
            $region54: #{flownet_mini_pred.1} parent=47 // pred_check_branch
              %671 = sbr.rel target = $region56
            $region55: #{flownet_mini_pred.1} parent=47 // pred_region
              %s673 = ssub.s32 256, 1
              loop: start=0, step=1, limit=1
              $region57: #{flownet_mini_pred.1} parent=55 // loop_pre_header
                _
              $region58: #{flownet_mini_pred.1} parent=55 // loop_header
                %s675 = sphi 0, %s679
                %p676 = scmp.ge.s32.totalorder %s675, 1
                %s680 = sphi %s651, %s651
                %s681 = sphi %s665, %s665
              $region59: #{flownet_mini_pred.1} parent=55 // loop_header_branch
                %678 = sbr.rel (%p676) target = $region63
              $region60: #{flownet_mini_pred.1} parent=55 // loop_body
                %v682 = vld [vmem:[%s680] sm:%s673]
                %683 = vst [vmem:[%s681] sm:%s673] %v682
                %v684 = vld [vmem:[%s680 + $0x8] sm:%s673]
                %685 = vst [vmem:[%s681 + $0x10] sm:%s673] %v684
                %v686 = vld [vmem:[%s680 + $0x10] sm:%s673]
                %687 = vst [vmem:[%s681 + $0x20] sm:%s673] %v686
                %v688 = vld [vmem:[%s680 + $0x18] sm:%s673]
                %689 = vst [vmem:[%s681 + $0x30] sm:%s673] %v688
              $region61: #{flownet_mini_pred.1} parent=55 // loop_footer
                %s679 = sadd.s32 1, %s675
              $region62: #{flownet_mini_pred.1} parent=55 // loop_footer_branch
                %674 = sbr.rel target = $region58
              $region63: #{flownet_mini_pred.1} parent=55 // loop_exit
                _
            $region56: #{flownet_mini_pred.1} parent=47 // pred_fallthru
              _
          $region48: #{flownet_mini_pred.1} parent=43 // pred_fallthru
            _
          %710 = vnop
        $region44: #{flownet_mini_pred.1} parent=35 // pred_fallthru
          _
        // Predicated region
        $region79: #{flownet_mini_pred.1} parent=35 // pred_check
          %p711 = pneg %p197
        $region80: #{flownet_mini_pred.1} parent=35 // pred_check_branch
          %713 = sbr.rel (%p711) target = $region82
        $region81: #{flownet_mini_pred.1} parent=35 // pred_region
          %s714 = smul.addr %s22, 8
          %s715 = sadd.s32 %s23, %s714
          %s716 = smul.addr %s715, 8
          %s717 = scalar_lea.vmem %s6, %s716
          // Predicated region
          $region83: #{flownet_mini_pred.1} parent=81 // pred_check
            _
          $region84: #{flownet_mini_pred.1} parent=81 // pred_check_branch
            %719 = sbr.rel (0) target = $region86
          $region85: #{flownet_mini_pred.1} parent=81 // pred_region
            // Predicated region
            $region87: #{flownet_mini_pred.1} parent=85 // pred_check
              _
            $region88: #{flownet_mini_pred.1} parent=85 // pred_check_branch
              %721 = sbr.rel (0) target = $region90
            $region89: #{flownet_mini_pred.1} parent=85 // pred_region
              // Predicated region
              $region102: #{flownet_mini_pred.1} parent=89 // pred_check
                _
              $region103: #{flownet_mini_pred.1} parent=89 // pred_check_branch
                %743 = sbr.rel (0) target = $region105
              $region104: #{flownet_mini_pred.1} parent=89 // pred_region
                loop: start=0, step=1, limit=1
                $region106: #{flownet_mini_pred.1} parent=104 // loop_pre_header
                  _
                $region107: #{flownet_mini_pred.1} parent=104 // loop_header
                  %s745 = sphi 0, %s749
                  %p746 = scmp.ge.s32.totalorder %s745, 1
                  %s750 = sphi %s655, %s655
                  %s751 = sphi %s717, %s717
                $region108: #{flownet_mini_pred.1} parent=104 // loop_header_branch
                  %748 = sbr.rel (%p746) target = $region112
                $region109: #{flownet_mini_pred.1} parent=104 // loop_body
                  %v752 = vld [vmem:[%s750] sm:$0xff]
                  %753 = vst [vmem:[%s751] sm:$0xff] %v752
                  %v754 = vld [vmem:[%s750 + $0x8] sm:$0xff]
                  %755 = vst [vmem:[%s751 + $0x10] sm:$0xff] %v754
                  %v756 = vld [vmem:[%s750 + $0x10] sm:$0xff]
                  %757 = vst [vmem:[%s751 + $0x20] sm:$0xff] %v756
                  %v758 = vld [vmem:[%s750 + $0x18] sm:$0xff]
                  %759 = vst [vmem:[%s751 + $0x30] sm:$0xff] %v758
                $region110: #{flownet_mini_pred.1} parent=104 // loop_footer
                  %s749 = sadd.s32 1, %s745
                $region111: #{flownet_mini_pred.1} parent=104 // loop_footer_branch
                  %744 = sbr.rel target = $region107
                $region112: #{flownet_mini_pred.1} parent=104 // loop_exit
                  _
              $region105: #{flownet_mini_pred.1} parent=89 // pred_fallthru
                _
              // Predicated region
              $region113: #{flownet_mini_pred.1} parent=89 // pred_check
                _
              $region114: #{flownet_mini_pred.1} parent=89 // pred_check_branch
                %761 = sbr.rel target = $region116
              $region115: #{flownet_mini_pred.1} parent=89 // pred_region
                _
              $region116: #{flownet_mini_pred.1} parent=89 // pred_fallthru
                _
            $region90: #{flownet_mini_pred.1} parent=85 // pred_fallthru
              _
            // Predicated region
            $region91: #{flownet_mini_pred.1} parent=85 // pred_check
              _
            $region92: #{flownet_mini_pred.1} parent=85 // pred_check_branch
              %723 = sbr.rel target = $region94
            $region93: #{flownet_mini_pred.1} parent=85 // pred_region
              %s725 = ssub.s32 256, 1
              loop: start=0, step=1, limit=1
              $region95: #{flownet_mini_pred.1} parent=93 // loop_pre_header
                _
              $region96: #{flownet_mini_pred.1} parent=93 // loop_header
                %s727 = sphi 0, %s731
                %p728 = scmp.ge.s32.totalorder %s727, 1
                %s732 = sphi %s655, %s655
                %s733 = sphi %s717, %s717
              $region97: #{flownet_mini_pred.1} parent=93 // loop_header_branch
                %730 = sbr.rel (%p728) target = $region101
              $region98: #{flownet_mini_pred.1} parent=93 // loop_body
                %v734 = vld [vmem:[%s732] sm:%s725]
                %735 = vst [vmem:[%s733] sm:%s725] %v734
                %v736 = vld [vmem:[%s732 + $0x8] sm:%s725]
                %737 = vst [vmem:[%s733 + $0x10] sm:%s725] %v736
                %v738 = vld [vmem:[%s732 + $0x10] sm:%s725]
                %739 = vst [vmem:[%s733 + $0x20] sm:%s725] %v738
                %v740 = vld [vmem:[%s732 + $0x18] sm:%s725]
                %741 = vst [vmem:[%s733 + $0x30] sm:%s725] %v740
              $region99: #{flownet_mini_pred.1} parent=93 // loop_footer
                %s731 = sadd.s32 1, %s727
              $region100: #{flownet_mini_pred.1} parent=93 // loop_footer_branch
                %726 = sbr.rel target = $region96
              $region101: #{flownet_mini_pred.1} parent=93 // loop_exit
                _
            $region94: #{flownet_mini_pred.1} parent=85 // pred_fallthru
              _
          $region86: #{flownet_mini_pred.1} parent=81 // pred_fallthru
            _
          %762 = vnop
        $region82: #{flownet_mini_pred.1} parent=35 // pred_fallthru
          _
      $region36: #{flownet_mini_pred.1} parent=5 // pred_fallthru
        _
      %p763 = scmp.le.s32.totalorder 2, %s13
      // Predicated region
      $region117: #{flownet_mini_pred.1} parent=5 // pred_check
        %p764 = pneg %p763
      $region118: #{flownet_mini_pred.1} parent=5 // pred_check_branch
        %766 = sbr.rel (%p764) target = $region120
      $region119: #{flownet_mini_pred.1} parent=5 // pred_region
        %s767 = ssub.s32 %s13, 2
        // Predicated region
        $region121: #{flownet_mini_pred.1} parent=119 // pred_check
          %p768 = pneg %p147
        $region122: #{flownet_mini_pred.1} parent=119 // pred_check_branch
          %770 = sbr.rel (%p768) target = $region124
        $region123: #{flownet_mini_pred.1} parent=119 // pred_region
          %p771 = scmp.lt.s32.totalorder %s24, 1
          %s772 = scalar_select %p771, %s24, 1
          %p773 = scmp.lt.s32.totalorder %s25, 1
          %s774 = scalar_select %p773, %s25, 1
          %s775 = smul.addr %s772, 2
          %s776 = sadd.s32 %s774, %s775
          %s777 = smul.addr %s776, 2
          %s778 = scalar_lea.vmem %s4, %s777
        $region124: #{flownet_mini_pred.1} parent=119 // pred_fallthru
          _
        // Predicated region
        $region125: #{flownet_mini_pred.1} parent=119 // pred_check
          %p779 = pneg %p175
        $region126: #{flownet_mini_pred.1} parent=119 // pred_check_branch
          %781 = sbr.rel (%p779) target = $region128
        $region127: #{flownet_mini_pred.1} parent=119 // pred_region
          %s782 = sand.u32 %s160, 1
          %s783 = sand.u32 %s160, 1
          %s784 = smul.addr %s783, 32
          %s785 = scalar_lea.vmem [#allocation2], %s784
        $region128: #{flownet_mini_pred.1} parent=119 // pred_fallthru
          _
        // Predicated region
        $region129: #{flownet_mini_pred.1} parent=119 // pred_check
          %p786 = pneg %p203
        $region130: #{flownet_mini_pred.1} parent=119 // pred_check_branch
          %788 = sbr.rel (%p786) target = $region132
        $region131: #{flownet_mini_pred.1} parent=119 // pred_region
          %s789 = sand.u32 %s188, 1
          %s790 = sand.u32 %s188, 1
          %s791 = smul.addr %s790, 32
          %s792 = scalar_lea.vmem [#allocation3], %s791
        $region132: #{flownet_mini_pred.1} parent=119 // pred_fallthru
          _
      $region120: #{flownet_mini_pred.1} parent=5 // pred_fallthru
        _
    $region6: #{flownet_mini_pred.1} parent=1 // loop_footer
      %s17 = sadd.s32 1, %s13
    $region7: #{flownet_mini_pred.1} parent=1 // loop_footer_branch
      %12 = sbr.rel target = $region3
    $region8: #{flownet_mini_pred.1} parent=1 // loop_exit
      _

</llo_original>
